<compile_context>
chip_gen: v5e
topology: v5e:2x2
jax: 0.10.0
libtpu: 0.0.40
codegen_flags: <defaults>
</compile_context>

<pallas_src>
import jax
import jax.numpy as jnp
from jax.experimental import pallas as pl
from jax.experimental.pallas import tpu as pltpu

_LANE = 128     # TPU lane width (last-dim alignment target)
_SUBLANE = 8    # f32 sublane alignment


def _round_up(n, m):
    return ((n + m - 1) // m) * m


def mlp_kernel(x_ref, w1_ref, b1_ref, w2_ref, b2_ref, o_ref):
    # Layer 1: x @ W1 + b1, ReLU   (operands lane-dense / hidden padded to 128)
    h = jnp.dot(x_ref[...], w1_ref[...], preferred_element_type=jnp.float32)
    h = jnp.maximum(h + b1_ref[...], 0.0)            # (TB, Hp) + (1, Hp)
    # Layer 2: h @ W2 + b2
    out = jnp.dot(h, w2_ref[...], preferred_element_type=jnp.float32)
    o_ref[...] = (out + b2_ref[...]).astype(o_ref.dtype)


def prepare_params(w1, b1, w2, b2):
    """Pad hidden / n_actions to the 128-lane width ONCE, outside the hot path.

    w1: (obs, hidden), b1: (hidden,) or (1, hidden)
    w2: (hidden, n_actions), b2: (n_actions,) or (1, n_actions)
    (PyTorch stores Linear weight as (out, in); pass the transpose here.)
    Returns padded (w1_p, b1_p, w2_p, b2_p) and n_actions.
    """
    obs, hidden = w1.shape
    n_actions = w2.shape[1]
    hid_p = _round_up(max(hidden, _LANE), _LANE)
    act_p = _round_up(max(n_actions, _LANE), _LANE)

    w1_p = jnp.zeros((obs, hid_p), jnp.float32).at[:, :hidden].set(w1)
    b1_p = jnp.zeros((1, hid_p), jnp.float32).at[:, :hidden].set(
        jnp.asarray(b1, jnp.float32).reshape(1, hidden))
    w2_p = jnp.zeros((hid_p, act_p), jnp.float32).at[:hidden, :n_actions].set(w2)
    b2_p = jnp.zeros((1, act_p), jnp.float32).at[:, :n_actions].set(
        jnp.asarray(b2, jnp.float32).reshape(1, n_actions))
    return (w1_p, b1_p, w2_p, b2_p), n_actions


def net_forward_padded(x, w1_p, b1_p, w2_p, b2_p, n_actions, *,
                       max_block_rows=2048):
    """Hot-path forward: assumes parameters were padded by prepare_params()."""
    B, obs = x.shape
    hid_p = w1_p.shape[1]
    act_p = w2_p.shape[1]

    if B <= max_block_rows:
        # Single grid step: block covers the full arrays, so no (8,128)
        # alignment constraint applies and no batch padding / x copy is needed.
        tb = B
        b_pad = B
        x_in = x
        grid = (1,)
        dim_sem = ("arbitrary",)
    else:
        # Large batch: tile rows; prefer a tile that divides B (no pad copy).
        tb = _round_up(min(max_block_rows, B), _SUBLANE)
        if B % tb != 0:
            for cand in range(tb, _SUBLANE - 1, -_SUBLANE):
                if B % cand == 0:
                    tb = cand
                    break
        b_pad = _round_up(B, tb)
        x_in = x if b_pad == B else jnp.zeros((b_pad, obs), x.dtype).at[:B].set(x)
        grid = (b_pad // tb,)
        dim_sem = ("parallel",)   # independent rows -> megacore / 2-TC on v7x

    cost = pl.CostEstimate(
        flops=2 * b_pad * (obs * hid_p + hid_p * act_p),
        transcendentals=0,
        bytes_accessed=4 * (x_in.size + w1_p.size + b1_p.size
                            + w2_p.size + b2_p.size + b_pad * act_p),
    )

    out_p = pl.pallas_call(
        mlp_kernel,
        out_shape=jax.ShapeDtypeStruct((b_pad, act_p), jnp.float32),
        grid_spec=pl.GridSpec(
            grid=grid,
            in_specs=[
                pl.BlockSpec((tb, obs), lambda i: (i, 0)),       # x tile
                pl.BlockSpec((obs, hid_p), lambda i: (0, 0)),    # W1 (resident)
                pl.BlockSpec((1, hid_p), lambda i: (0, 0)),      # b1 (resident)
                pl.BlockSpec((hid_p, act_p), lambda i: (0, 0)),  # W2 (resident)
                pl.BlockSpec((1, act_p), lambda i: (0, 0)),      # b2 (resident)
            ],
            out_specs=pl.BlockSpec((tb, act_p), lambda i: (i, 0)),
        ),
        compiler_params=pltpu.CompilerParams(dimension_semantics=dim_sem),
        cost_estimate=cost,
    )(x_in, w1_p, b1_p, w2_p, b2_p)

    # Slice padded batch rows (if any) and padded action lanes back off.
    return out_p[:B, :n_actions]


def net_forward(x, w1, b1, w2, b2, **kwargs):
    """Convenience wrapper (pads params every call — prefer prepare_params +
    net_forward_padded in a rollout/training loop)."""
    (w1_p, b1_p, w2_p, b2_p), n_actions = prepare_params(w1, b1, w2, b2)
    return net_forward_padded(x, w1_p, b1_p, w2_p, b2_p, n_actions, **kwargs)


def reference_forward(x, w1, b1, w2, b2):
    h = jnp.maximum(x @ w1 + b1, 0.0)
    return h @ w2 + b2


if __name__ == "__main__":
    # FrozenLake-like sizes: obs_size=16, hidden=32, n_actions=4.
    B, OBS, HIDDEN, ACTIONS = 128, 16, 32, 4

    key = jax.random.PRNGKey(0)
    kx, kw1, kb1, kw2, kb2, kx2 = jax.random.split(key, 6)

    x = jax.random.normal(kx, (B, OBS), dtype=jnp.float32)

    # Deterministic synthetic parameters; (in, out) layout so kernel does x @ W.
    w1 = jax.random.uniform(kw1, (OBS, HIDDEN), dtype=jnp.float32,
                            minval=-1.0, maxval=1.0) / jnp.sqrt(OBS)
    b1 = jax.random.uniform(kb1, (1, HIDDEN), dtype=jnp.float32,
                            minval=-1.0, maxval=1.0) / jnp.sqrt(OBS)
    w2 = jax.random.uniform(kw2, (HIDDEN, ACTIONS), dtype=jnp.float32,
                            minval=-1.0, maxval=1.0) / jnp.sqrt(HIDDEN)
    b2 = jax.random.uniform(kb2, (1, ACTIONS), dtype=jnp.float32,
                            minval=-1.0, maxval=1.0) / jnp.sqrt(HIDDEN)

    # Pad params ONCE (outside the hot path).
    (w1_p, b1_p, w2_p, b2_p), n_act = prepare_params(w1, b1, w2, b2)

    # Path 1: small batch -> single-block grid=(1,), no batch padding.
    out = net_forward_padded(x, w1_p, b1_p, w2_p, b2_p, n_act)
    out = jax.block_until_ready(out)
    ref = reference_forward(x, w1, b1, w2, b2)
    assert out.shape == (B, ACTIONS)
    assert jnp.allclose(out, ref, atol=1e-5, rtol=1e-5), "mismatch (single block)"

    # Path 2: large batch -> tiled grid with "parallel" batch axis (tb | B,
    # so no pad copy); exercises the pipelined / megacore branch.
    B2 = 1024
    x2 = jax.random.normal(kx2, (B2, OBS), dtype=jnp.float32)
    out2 = net_forward_padded(x2, w1_p, b1_p, w2_p, b2_p, n_act,
                              max_block_rows=256)
    out2 = jax.block_until_ready(out2)
    ref2 = reference_forward(x2, w1, b1, w2, b2)
    assert out2.shape == (B2, ACTIONS)
    assert jnp.allclose(out2, ref2, atol=1e-5, rtol=1e-5), "mismatch (tiled)"

    print("KERNEL_OK")
</pallas_src>

<mosaic_0001>
module attributes {stable_mosaic.version = 11 : i64} {
  func.func @mlp_kernel(%arg0: i32, %arg1: memref<128x16xf32, #tpu.memory_space<vmem>>, %arg2: memref<16x128xf32, #tpu.memory_space<vmem>>, %arg3: memref<1x128xf32, #tpu.memory_space<vmem>>, %arg4: memref<128x128xf32, #tpu.memory_space<vmem>>, %arg5: memref<1x128xf32, #tpu.memory_space<vmem>>, %arg6: memref<128x128xf32, #tpu.memory_space<vmem>>) attributes {dimension_semantics = [#tpu.dimension_semantics<arbitrary>], iteration_bounds = array<i64: 1>, scalar_prefetch = 0 : i64, scratch_operands = 0 : i64, tpu.core_type = #tpu.core_type<tc>, window_params = [{transform_indices = @transform_0, window_bounds = array<i64: 128, 16>}, {pipeline_mode = #tpu.pipeline_mode<synchronous>, transform_indices = @transform_1, window_bounds = array<i64: 16, 128>}, {pipeline_mode = #tpu.pipeline_mode<synchronous>, transform_indices = @transform_2, window_bounds = array<i64: 1, 128>}, {pipeline_mode = #tpu.pipeline_mode<synchronous>, transform_indices = @transform_3, window_bounds = array<i64: 128, 128>}, {pipeline_mode = #tpu.pipeline_mode<synchronous>, transform_indices = @transform_4, window_bounds = array<i64: 1, 128>}, {transform_indices = @transform_5, window_bounds = array<i64: 128, 128>}]} {
    %c0 = arith.constant 0 : index
    %c0_0 = arith.constant 0 : index
    %0 = vector.load %arg1[%c0, %c0_0] : memref<128x16xf32, #tpu.memory_space<vmem>>, vector<128x16xf32>
    %c0_1 = arith.constant 0 : index
    %c0_2 = arith.constant 0 : index
    %1 = vector.load %arg2[%c0_1, %c0_2] : memref<16x128xf32, #tpu.memory_space<vmem>>, vector<16x128xf32>
    %cst = arith.constant dense<0.000000e+00> : vector<128x128xf32>
    %2 = tpu.matmul %0, %1, %cst {dimension_numbers = #tpu.dot_dimension_numbers<[1], [0], [0], [1], [0, 0, 1, 1], [], []>} : vector<128x16xf32>, vector<16x128xf32>, vector<128x128xf32> -> vector<128x128xf32>
    %c0_3 = arith.constant 0 : index
    %c0_4 = arith.constant 0 : index
    %3 = vector.load %arg3[%c0_3, %c0_4] : memref<1x128xf32, #tpu.memory_space<vmem>>, vector<1x128xf32>
    %4 = vector.broadcast %3 : vector<1x128xf32> to vector<128x128xf32>
    %5 = arith.addf %2, %4 : vector<128x128xf32>
    %cst_5 = arith.constant 0.000000e+00 : f32
    %6 = vector.broadcast %cst_5 : f32 to vector<128x128xf32>
    %7 = arith.maximumf %5, %6 : vector<128x128xf32>
    %c0_6 = arith.constant 0 : index
    %c0_7 = arith.constant 0 : index
    %8 = vector.load %arg4[%c0_6, %c0_7] : memref<128x128xf32, #tpu.memory_space<vmem>>, vector<128x128xf32>
    %cst_8 = arith.constant dense<0.000000e+00> : vector<128x128xf32>
    %9 = tpu.matmul %7, %8, %cst_8 {dimension_numbers = #tpu.dot_dimension_numbers<[1], [0], [0], [1], [0, 0, 1, 1], [], []>} : vector<128x128xf32>, vector<128x128xf32>, vector<128x128xf32> -> vector<128x128xf32>
    %c0_9 = arith.constant 0 : index
    %c0_10 = arith.constant 0 : index
    %10 = vector.load %arg5[%c0_9, %c0_10] : memref<1x128xf32, #tpu.memory_space<vmem>>, vector<1x128xf32>
    %11 = vector.broadcast %10 : vector<1x128xf32> to vector<128x128xf32>
    %12 = arith.addf %9, %11 : vector<128x128xf32>
    %c0_11 = arith.constant 0 : index
    %c0_12 = arith.constant 0 : index
    %13 = vector.load %arg6[%c0_11, %c0_12] : memref<128x128xf32, #tpu.memory_space<vmem>>, vector<128x128xf32>
    tpu.vector_store %arg6[%c0_11, %c0_12], %12 {strides = array<i32>} : memref<128x128xf32, #tpu.memory_space<vmem>>, vector<128x128xf32>,
    return
  }
  func.func @transform_0(%arg0: i32) -> (i32, i32) {
    %c0_i32 = arith.constant 0 : i32
    %c0_i32_0 = arith.constant 0 : i32
    return %arg0, %c0_i32 : i32, i32
  }
  func.func @transform_1(%arg0: i32) -> (i32, i32) {
    %c0_i32 = arith.constant 0 : i32
    %c0_i32_0 = arith.constant 0 : i32
    %c0_i32_1 = arith.constant 0 : i32
    return %c0_i32, %c0_i32_0 : i32, i32
  }
  func.func @transform_2(%arg0: i32) -> (i32, i32) {
    %c0_i32 = arith.constant 0 : i32
    %c0_i32_0 = arith.constant 0 : i32
    %c0_i32_1 = arith.constant 0 : i32
    return %c0_i32, %c0_i32_0 : i32, i32
  }
  func.func @transform_3(%arg0: i32) -> (i32, i32) {
    %c0_i32 = arith.constant 0 : i32
    %c0_i32_0 = arith.constant 0 : i32
    %c0_i32_1 = arith.constant 0 : i32
    return %c0_i32, %c0_i32_0 : i32, i32
  }
  func.func @transform_4(%arg0: i32) -> (i32, i32) {
    %c0_i32 = arith.constant 0 : i32
    %c0_i32_0 = arith.constant 0 : i32
    %c0_i32_1 = arith.constant 0 : i32
    return %c0_i32, %c0_i32_0 : i32, i32
  }
  func.func @transform_5(%arg0: i32) -> (i32, i32) {
    %c0_i32 = arith.constant 0 : i32
    %c0_i32_0 = arith.constant 0 : i32
    return %arg0, %c0_i32 : i32, i32
  }
}

</mosaic_0001>

<llo_original>
// kernel: tpu_custom_call.1
$region0: #{tpu_custom_call.1}
  #allocation0 [shape = 'u32[]', space=smem, size = 0x4, offset = 0x4, fixed_abs, tag = 'smem constant byte address 0x4 - core index']
  #allocation1 [shape = 'u32[72,128]{1,0:T(1,128)}', space=vmem, size = 0x9000, scoped, tag = 'internal scratch']
  %s0 = inlined_call_operand.vmem [shape: f32[128,16], index: 0, kind: input, shape index: {}]
  %s1 = inlined_call_operand.vmem [shape: f32[16,128], index: 1, kind: input, shape index: {}]
  %s2 = inlined_call_operand.vmem [shape: f32[1,128], index: 2, kind: input, shape index: {}]
  %s3 = inlined_call_operand.vmem [shape: f32[128,128], index: 3, kind: input, shape index: {}]
  %s4 = inlined_call_operand.vmem [shape: f32[1,128], index: 4, kind: input, shape index: {}]
  %s5 = inlined_call_operand.hbm [shape: f32[128,128], index: 5, kind: output, shape index: {}]
  %s6 = sld [smem:[#allocation0]]
  $region30: #{tpu_custom_call.1} parent=0
    _
  %s8 = ssub.s32 1, %s6
  %s9 = scalar_select 0, %s8, %s6
  $region1: #{tpu_custom_call.1} parent=0
    #allocation2 [shape = 'u8[65536]{0}', space=vmem, size = 0x10000, scoped, tag = 'output window, operand 0, single buffered']
    #allocation3 [shape = 's32[1]{0}', space=sflag, size = 0x4, scoped, tag = 'scoped memory for tpu_custom_call.1']
    %10 = vsyncpa [#allocation3], 0
    // Predicated region
    $region2: #{tpu_custom_call.1} parent=1 // pred_check
      _
    $region3: #{tpu_custom_call.1} parent=1 // pred_check_branch
      %12 = sbr.rel (0) target = $region5
    $region4: #{tpu_custom_call.1} parent=1 // pred_region
      _
    $region5: #{tpu_custom_call.1} parent=1 // pred_fallthru
      _
    // Predicated region
    $region6: #{tpu_custom_call.1} parent=1 // pred_check
      _
    $region7: #{tpu_custom_call.1} parent=1 // pred_check_branch
      %14 = sbr.rel (0) target = $region9
    $region8: #{tpu_custom_call.1} parent=1 // pred_region
      _
    $region9: #{tpu_custom_call.1} parent=1 // pred_fallthru
      _
    // Predicated region
    $region10: #{tpu_custom_call.1} parent=1 // pred_check
      _
    $region11: #{tpu_custom_call.1} parent=1 // pred_check_branch
      %16 = sbr.rel (0) target = $region13
    $region12: #{tpu_custom_call.1} parent=1 // pred_region
      _
    $region13: #{tpu_custom_call.1} parent=1 // pred_fallthru
      _
    // Predicated region
    $region14: #{tpu_custom_call.1} parent=1 // pred_check
      _
    $region15: #{tpu_custom_call.1} parent=1 // pred_check_branch
      %18 = sbr.rel (0) target = $region17
    $region16: #{tpu_custom_call.1} parent=1 // pred_region
      _
    $region17: #{tpu_custom_call.1} parent=1 // pred_fallthru
      _
    // Predicated region
    $region18: #{tpu_custom_call.1} parent=1 // pred_check
      _
    $region19: #{tpu_custom_call.1} parent=1 // pred_check_branch
      %20 = sbr.rel (0) target = $region21
    $region20: #{tpu_custom_call.1} parent=1 // pred_region
      _
    $region21: #{tpu_custom_call.1} parent=1 // pred_fallthru
      _
    %v21 = vld [vmem:[%s0] sm:$0xff]
    %v22 = vld [vmem:[%s0 + $0x8] sm:$0xff]
    %v23 = vld [vmem:[%s0 + $0x10] sm:$0xff]
    %v24 = vld [vmem:[%s0 + $0x18] sm:$0xff]
    %v25 = vld [vmem:[%s0 + $0x20] sm:$0xff]
    %v26 = vld [vmem:[%s0 + $0x28] sm:$0xff]
    %v27 = vld [vmem:[%s0 + $0x30] sm:$0xff]
    %v28 = vld [vmem:[%s0 + $0x38] sm:$0xff]
    %v29 = vld [vmem:[%s0 + $0x40] sm:$0xff]
    %v30 = vld [vmem:[%s0 + $0x48] sm:$0xff]
    %v31 = vld [vmem:[%s0 + $0x50] sm:$0xff]
    %v32 = vld [vmem:[%s0 + $0x58] sm:$0xff]
    %v33 = vld [vmem:[%s0 + $0x60] sm:$0xff]
    %v34 = vld [vmem:[%s0 + $0x68] sm:$0xff]
    %v35 = vld [vmem:[%s0 + $0x70] sm:$0xff]
    %v36 = vld [vmem:[%s0 + $0x78] sm:$0xff]
    %v37 = vld [vmem:[%s1] sm:$0xff]
    %v38 = vld [vmem:[%s1 + $0x8] sm:$0xff]
    %v39 = vld [vmem:[%s2] sm:$0x1]
    %v41 = vperm.slane %v39, 0
    %vm43 = vcmask 130048
    %v45 = vsel %vm43, %v21, 0
    %v48 = vsel %vm43, %v22, 0
    %v51 = vsel %vm43, %v23, 0
    %v54 = vsel %vm43, %v24, 0
    %v57 = vsel %vm43, %v25, 0
    %v60 = vsel %vm43, %v26, 0
    %v63 = vsel %vm43, %v27, 0
    %v66 = vsel %vm43, %v28, 0
    %v69 = vsel %vm43, %v29, 0
    %v72 = vsel %vm43, %v30, 0
    %v75 = vsel %vm43, %v31, 0
    %v78 = vsel %vm43, %v32, 0
    %v81 = vsel %vm43, %v33, 0
    %v84 = vsel %vm43, %v34, 0
    %v87 = vsel %vm43, %v35, 0
    %v90 = vsel %vm43, %v36, 0
    %92 = vmatpush.msra.mxu0 0.0
    %93 = vmatpush.msra.mxu0 0.0
    %94 = vmatpush.msra.mxu0 0.0
    %95 = vmatpush.msra.mxu0 0.0
    %96 = vmatpush.msra.mxu0 0.0
    %97 = vmatpush.msra.mxu0 0.0
    %98 = vmatpush.msra.mxu0 0.0
    %99 = vmatpush.msra.mxu0 0.0
    %100 = vmatpush.msra.mxu0 0.0
    %101 = vmatpush.msra.mxu0 0.0
    %102 = vmatpush.msra.mxu0 0.0
    %103 = vmatpush.msra.mxu0 0.0
    %104 = vmatpush.msra.mxu0 0.0
    %105 = vmatpush.msra.mxu0 0.0
    %106 = vmatpush.msra.mxu0 %v38
    %107 = vmatpush.msra.mxu0 %v37
    %108 = vmatmul.f32.gmra.mxu0 %v45
    %v109 = vpop.f32.mrf.mxu0
    %v110 = vadd.f32 %v41, %v109
    %111 = vmatmul.f32.gmra.mxu0 %v48
    %v112 = vpop.f32.mrf.mxu0
    %v113 = vadd.f32 %v41, %v112
    %114 = vmatmul.f32.gmra.mxu0 %v51
    %v115 = vpop.f32.mrf.mxu0
    %v116 = vadd.f32 %v41, %v115
    %117 = vmatmul.f32.gmra.mxu0 %v54
    %v118 = vpop.f32.mrf.mxu0
    %v119 = vadd.f32 %v41, %v118
    %120 = vmatmul.f32.gmra.mxu0 %v57
    %v121 = vpop.f32.mrf.mxu0
    %v122 = vadd.f32 %v41, %v121
    %123 = vmatmul.f32.gmra.mxu0 %v60
    %v124 = vpop.f32.mrf.mxu0
    %v125 = vadd.f32 %v41, %v124
    %126 = vmatmul.f32.gmra.mxu0 %v63
    %v127 = vpop.f32.mrf.mxu0
    %v128 = vadd.f32 %v41, %v127
    %129 = vmatmul.f32.gmra.mxu0 %v66
    %v130 = vpop.f32.mrf.mxu0
    %v131 = vadd.f32 %v41, %v130
    %132 = vmatmul.f32.gmra.mxu0 %v69
    %v133 = vpop.f32.mrf.mxu0
    %v134 = vadd.f32 %v41, %v133
    %135 = vmatmul.f32.gmra.mxu0 %v72
    %v136 = vpop.f32.mrf.mxu0
    %v137 = vadd.f32 %v41, %v136
    %138 = vmatmul.f32.gmra.mxu0 %v75
    %v139 = vpop.f32.mrf.mxu0
    %v140 = vadd.f32 %v41, %v139
    %141 = vmatmul.f32.gmra.mxu0 %v78
    %v142 = vpop.f32.mrf.mxu0
    %v143 = vadd.f32 %v41, %v142
    %144 = vmatmul.f32.gmra.mxu0 %v81
    %v145 = vpop.f32.mrf.mxu0
    %v146 = vadd.f32 %v41, %v145
    %147 = vmatmul.f32.gmra.mxu0 %v84
    %v148 = vpop.f32.mrf.mxu0
    %v149 = vadd.f32 %v41, %v148
    %150 = vmatmul.f32.gmra.mxu0 %v87
    %v151 = vpop.f32.mrf.mxu0
    %v152 = vadd.f32 %v41, %v151
    %153 = vmatmul.f32.gmra.mxu0 %v90
    %v154 = vpop.f32.mrf.mxu0
    %v155 = vadd.f32 %v41, %v154
    %156 = vdwg.mxu0
    %v157 = vmax.f32 %v110, 0.0
    %v158 = vmax.f32 %v113, 0.0
    %v159 = vmax.f32 %v116, 0.0
    %v160 = vmax.f32 %v119, 0.0
    %v161 = vmax.f32 %v122, 0.0
    %v162 = vmax.f32 %v125, 0.0
    %v163 = vmax.f32 %v128, 0.0
    %v164 = vmax.f32 %v131, 0.0
    %v165 = vmax.f32 %v134, 0.0
    %v166 = vmax.f32 %v137, 0.0
    %v167 = vmax.f32 %v140, 0.0
    %v168 = vmax.f32 %v143, 0.0
    %v169 = vmax.f32 %v146, 0.0
    %v170 = vmax.f32 %v149, 0.0
    %v171 = vmax.f32 %v152, 0.0
    %v172 = vmax.f32 %v155, 0.0
    %v173 = vld [vmem:[%s3] sm:$0xff]
    %v174 = vld [vmem:[%s3 + $0x8] sm:$0xff]
    %v175 = vld [vmem:[%s3 + $0x10] sm:$0xff]
    %v176 = vld [vmem:[%s3 + $0x18] sm:$0xff]
    %v177 = vld [vmem:[%s3 + $0x20] sm:$0xff]
    %v178 = vld [vmem:[%s3 + $0x28] sm:$0xff]
    %v179 = vld [vmem:[%s3 + $0x30] sm:$0xff]
    %v180 = vld [vmem:[%s3 + $0x38] sm:$0xff]
    %v181 = vld [vmem:[%s3 + $0x40] sm:$0xff]
    %v182 = vld [vmem:[%s3 + $0x48] sm:$0xff]
    %v183 = vld [vmem:[%s3 + $0x50] sm:$0xff]
    %v184 = vld [vmem:[%s3 + $0x58] sm:$0xff]
    %v185 = vld [vmem:[%s3 + $0x60] sm:$0xff]
    %v186 = vld [vmem:[%s3 + $0x68] sm:$0xff]
    %v187 = vld [vmem:[%s3 + $0x70] sm:$0xff]
    %v188 = vld [vmem:[%s3 + $0x78] sm:$0xff]
    %v189 = vld [vmem:[%s4] sm:$0x1]
    %v191 = vperm.slane %v189, 0
    %193 = vmatpush.msra.mxu0 %v188
    %194 = vmatpush.msra.mxu0 %v187
    %195 = vmatpush.msra.mxu0 %v186
    %196 = vmatpush.msra.mxu0 %v185
    %197 = vmatpush.msra.mxu0 %v184
    %198 = vmatpush.msra.mxu0 %v183
    %199 = vmatpush.msra.mxu0 %v182
    %200 = vmatpush.msra.mxu0 %v181
    %201 = vmatpush.msra.mxu0 %v180
    %202 = vmatpush.msra.mxu0 %v179
    %203 = vmatpush.msra.mxu0 %v178
    %204 = vmatpush.msra.mxu0 %v177
    %205 = vmatpush.msra.mxu0 %v176
    %206 = vmatpush.msra.mxu0 %v175
    %207 = vmatpush.msra.mxu0 %v174
    %208 = vmatpush.msra.mxu0 %v173
    %209 = vmatmul.f32.gmra.mxu0 %v157
    %v210 = vpop.f32.mrf.mxu0
    %v211 = vadd.f32 %v191, %v210
    %212 = vmatmul.f32.gmra.mxu0 %v158
    %v213 = vpop.f32.mrf.mxu0
    %v214 = vadd.f32 %v191, %v213
    %215 = vmatmul.f32.gmra.mxu0 %v159
    %v216 = vpop.f32.mrf.mxu0
    %v217 = vadd.f32 %v191, %v216
    %218 = vmatmul.f32.gmra.mxu0 %v160
    %v219 = vpop.f32.mrf.mxu0
    %v220 = vadd.f32 %v191, %v219
    %221 = vmatmul.f32.gmra.mxu0 %v161
    %v222 = vpop.f32.mrf.mxu0
    %v223 = vadd.f32 %v191, %v222
    %224 = vmatmul.f32.gmra.mxu0 %v162
    %v225 = vpop.f32.mrf.mxu0
    %v226 = vadd.f32 %v191, %v225
    %227 = vmatmul.f32.gmra.mxu0 %v163
    %v228 = vpop.f32.mrf.mxu0
    %v229 = vadd.f32 %v191, %v228
    %230 = vmatmul.f32.gmra.mxu0 %v164
    %v231 = vpop.f32.mrf.mxu0
    %v232 = vadd.f32 %v191, %v231
    %233 = vmatmul.f32.gmra.mxu0 %v165
    %v234 = vpop.f32.mrf.mxu0
    %v235 = vadd.f32 %v191, %v234
    %236 = vmatmul.f32.gmra.mxu0 %v166
    %v237 = vpop.f32.mrf.mxu0
    %v238 = vadd.f32 %v191, %v237
    %239 = vmatmul.f32.gmra.mxu0 %v167
    %v240 = vpop.f32.mrf.mxu0
    %v241 = vadd.f32 %v191, %v240
    %242 = vmatmul.f32.gmra.mxu0 %v168
    %v243 = vpop.f32.mrf.mxu0
    %v244 = vadd.f32 %v191, %v243
    %245 = vmatmul.f32.gmra.mxu0 %v169
    %v246 = vpop.f32.mrf.mxu0
    %v247 = vadd.f32 %v191, %v246
    %248 = vmatmul.f32.gmra.mxu0 %v170
    %v249 = vpop.f32.mrf.mxu0
    %v250 = vadd.f32 %v191, %v249
    %251 = vmatmul.f32.gmra.mxu0 %v171
    %v252 = vpop.f32.mrf.mxu0
    %v253 = vadd.f32 %v191, %v252
    %254 = vmatmul.f32.gmra.mxu0 %v172
    %v255 = vpop.f32.mrf.mxu0
    %v256 = vadd.f32 %v191, %v255
    %257 = vdwg.mxu0
    %258 = vst [vmem:[#allocation2] sm:$0xff] %v211
    %259 = vst [vmem:[#allocation2 + $0x8] sm:$0xff] %v214
    %260 = vst [vmem:[#allocation2 + $0x10] sm:$0xff] %v217
    %261 = vst [vmem:[#allocation2 + $0x18] sm:$0xff] %v220
    %262 = vst [vmem:[#allocation2 + $0x20] sm:$0xff] %v223
    %263 = vst [vmem:[#allocation2 + $0x28] sm:$0xff] %v226
    %264 = vst [vmem:[#allocation2 + $0x30] sm:$0xff] %v229
    %265 = vst [vmem:[#allocation2 + $0x38] sm:$0xff] %v232
    %266 = vst [vmem:[#allocation2 + $0x40] sm:$0xff] %v235
    %267 = vst [vmem:[#allocation2 + $0x48] sm:$0xff] %v238
    %268 = vst [vmem:[#allocation2 + $0x50] sm:$0xff] %v241
    %269 = vst [vmem:[#allocation2 + $0x58] sm:$0xff] %v244
    %270 = vst [vmem:[#allocation2 + $0x60] sm:$0xff] %v247
    %271 = vst [vmem:[#allocation2 + $0x68] sm:$0xff] %v250
    %272 = vst [vmem:[#allocation2 + $0x70] sm:$0xff] %v253
    %273 = vst [vmem:[#allocation2 + $0x78] sm:$0xff] %v256
    // Predicated region
    $region22: #{tpu_custom_call.1} parent=1 // pred_check
      _
    $region23: #{tpu_custom_call.1} parent=1 // pred_check_branch
      %275 = sbr.rel (0) target = $region25
    $region24: #{tpu_custom_call.1} parent=1 // pred_region
      %277 = vsyncadd [#allocation3], 0
      %s278 = sshll.u32 [#allocation2], 4
      %s279 = int_to_ptr.vmem [resolvable:$true] %s278
      %s280 = sshll.u32 %s5, 4
      %s281 = int_to_ptr.hbm [resolvable:$true] %s280
      %286 = dma.vmem_to_hbm [thread:$0]  %s279, 2048, %s281, [#allocation3], 128, 128, 8
    $region25: #{tpu_custom_call.1} parent=1 // pred_fallthru
      _
    // Predicated region
    $region26: #{tpu_custom_call.1} parent=1 // pred_check
      _
    $region27: #{tpu_custom_call.1} parent=1 // pred_check_branch
      %288 = sbr.rel (0) target = $region29
    $region28: #{tpu_custom_call.1} parent=1 // pred_region
      %290 = dma.done [#allocation3], 2048
    $region29: #{tpu_custom_call.1} parent=1 // pred_fallthru
      _
    %291 = vsyncpa [#allocation3], 1

</llo_original>
